<compile_context>
chip_gen: v5e
topology: v5e:2x2
jax: 0.10.0
libtpu: 0.0.40
codegen_flags: <defaults>
</compile_context>

<pallas_src>
import functools

import jax
import jax.numpy as jnp
from jax.experimental import pallas as pl
from jax.experimental.pallas import tpu as pltpu


def _diag_block_kernel(q_ref, k_ref, v_ref, o_ref, *, use_bf16):
    """One grid step = a batch of independent (w, D) diagonal blocks.

    q_ref/k_ref/v_ref/o_ref: (BLK, w, D) VMEM tiles; each of the BLK slices is
    one diagonal block of one (batch, head) pair.
    """
    q = q_ref[...]
    k = k_ref[...]
    v = v_ref[...]

    # bf16 operands (f32 accumulation) feed the MXU at its native rate on
    # v6e/v7x and halve operand footprint; the softmax stays in f32 (which is
    # also what v5e's VPU/EUP require).
    mm_dtype = jnp.bfloat16 if use_bf16 else jnp.float32
    qm = q.astype(mm_dtype)
    km = k.astype(mm_dtype)

    # Batched QK^T contracting the D axis directly (no explicit k transpose,
    # so no XLU transpose / extra VMEM copy of k).
    s = jnp.einsum(
        "bqd,bkd->bqk", qm, km, preferred_element_type=jnp.float32
    )  # (BLK, w, w)

    # Numerically-stable softmax over the block width, in f32.
    s = s - jnp.max(s, axis=-1, keepdims=True)
    p = jnp.exp(s)
    denom = jnp.sum(p, axis=-1, keepdims=True)
    if use_bf16:
        # EUP vrcp: occupies an otherwise-idle slot, freeing VALU cycles.
        p = p * pl.reciprocal(denom, approx=True)
    else:
        p = p / denom  # exact path (keeps the 1e-5 self-test tolerance)

    # Weighted sum of values on the MXU.
    out = jnp.einsum(
        "bqk,bkd->bqd",
        p.astype(mm_dtype),
        v.astype(mm_dtype),
        preferred_element_type=jnp.float32,
    )  # (BLK, w, D)
    o_ref[...] = out.astype(o_ref.dtype)


def _tail_mean_kernel(v_ref, o_ref):
    """Leftover rows (L % block_size): the whole score row is -10000, so the
    softmax is uniform 1/L over all L positions and the output is mean(v)."""
    v = v_ref[0].astype(jnp.float32)                        # (L, D)
    inv_len = jnp.float32(1.0 / v.shape[0])
    mean_v = jnp.sum(v, axis=0, keepdims=True) * inv_len    # (1, D)
    o_ref[0] = jnp.broadcast_to(mean_v, o_ref.shape[1:]).astype(o_ref.dtype)


def _largest_divisor_leq(n, cap):
    cap = max(1, min(n, int(cap)))
    for d in range(cap, 0, -1):
        if n % d == 0:
            return d
    return 1


@functools.partial(jax.jit, static_argnames=("block_size", "precision"))
def diag_attention(q, k, v, *, block_size, precision="bf16"):
    """q, k, v: (B, H, L, D) arrays.  Returns (B, H, L, D).

    precision: "bf16" -> bf16 MXU operands + approx reciprocal (peak on v6e/v7x),
               "fp32" -> exact f32 everywhere.
    """
    # TODO(synk): optional `mask` argument of the PyTorch forward is not
    # plumbed through (mask=None path only).
    B, H, L, D = q.shape
    w = block_size
    nb = L // w
    covered = nb * w
    rem = L - covered
    BH = B * H
    use_bf16 = precision == "bf16"

    qf = q.reshape(BH, L, D)
    kf = k.reshape(BH, L, D)
    vf = v.reshape(BH, L, D)

    pieces = []

    if nb > 0:
        # Layout glue (wrapper-side, pure XLA reshapes): expose every diagonal
        # block as one slice of a flat "block instance" axis of length
        # M = BH * nb.  The last two dims of every BlockSpec then equal the
        # full array dims, so arbitrary block_size / head_dim never hit the
        # (8, 128) tiling constraint.
        M = BH * nb
        qb = qf[:, :covered].reshape(M, w, D)
        kb = kf[:, :covered].reshape(M, w, D)
        vb = vf[:, :covered].reshape(M, w, D)

        # Batch many block instances per grid step so each step amortizes the
        # ~0.35us pipeline overhead, while the double-buffered tiles + (w, w)
        # score temps stay far under the scoped VMEM limit on every chip
        # (including v7x's 64 MiB VMEM / 32 MiB default scoped limit).
        cap = min(128 * 1024 // max(1, w * D), 256 * 1024 // max(1, w * w))
        blk = _largest_divisor_leq(M, cap)

        spec = pl.BlockSpec((blk, w, D), lambda i: (i, 0, 0))
        out_blocks = pl.pallas_call(
            functools.partial(_diag_block_kernel, use_bf16=use_bf16),
            out_shape=jax.ShapeDtypeStruct((M, w, D), q.dtype),
            grid_spec=pltpu.PrefetchScalarGridSpec(
                num_scalar_prefetch=0,
                grid=(M // blk,),
                in_specs=[spec, spec, spec],
                out_specs=spec,
            ),
            compiler_params=pltpu.CompilerParams(
                dimension_semantics=("parallel",)
            ),
        )(qb, kb, vb)
        pieces.append(out_blocks.reshape(BH, covered, D))

    if rem > 0:
        tail = pl.pallas_call(
            _tail_mean_kernel,
            out_shape=jax.ShapeDtypeStruct((BH, rem, D), q.dtype),
            grid_spec=pltpu.PrefetchScalarGridSpec(
                num_scalar_prefetch=0,
                grid=(BH,),
                in_specs=[pl.BlockSpec((1, L, D), lambda i: (i, 0, 0))],
                out_specs=pl.BlockSpec((1, rem, D), lambda i: (i, 0, 0)),
            ),
            compiler_params=pltpu.CompilerParams(
                dimension_semantics=("parallel",)
            ),
        )(vf)
        pieces.append(tail)

    out = pieces[0] if len(pieces) == 1 else jnp.concatenate(pieces, axis=1)
    return out.reshape(B, H, L, D)


def _reference(q, k, v, block_size):
    """Pure-JAX replica of the dense PyTorch forward, for validation."""
    B, H, L, D = q.shape
    w = block_size
    num_blocks = L // w
    score = jnp.full((B, H, L, L), -10000.0, dtype=jnp.float32)
    for i in range(num_blocks):
        blk = jnp.einsum(
            "bhqd,bhkd->bhqk",
            q[:, :, i * w:(i + 1) * w, :],
            k[:, :, i * w:(i + 1) * w, :],
        )
        score = score.at[:, :, i * w:(i + 1) * w, i * w:(i + 1) * w].set(blk)
    score = jax.nn.softmax(score, axis=-1)
    return jnp.einsum("bhqk,bhkd->bhqd", score, v)


if __name__ == "__main__":
    # Small shapes consistent with the module: (batch, head, length, d_tensor)
    B, H, L, D = 2, 2, 16, 8
    block_size = 5  # 3 diagonal blocks + 1 leftover row (exercises the tail)

    key = jax.random.PRNGKey(0)
    kq, kk, kv = jax.random.split(key, 3)
    q = jax.random.normal(kq, (B, H, L, D), dtype=jnp.float32)
    k = jax.random.normal(kk, (B, H, L, D), dtype=jnp.float32)
    v = jax.random.normal(kv, (B, H, L, D), dtype=jnp.float32)

    ref = _reference(q, k, v, block_size)

    # Exact f32 path: must match the dense reference tightly.
    out_fp32 = jax.block_until_ready(
        diag_attention(q, k, v, block_size=block_size, precision="fp32"))
    assert out_fp32.shape == (B, H, L, D)
    err32 = float(jnp.max(jnp.abs(out_fp32 - ref)))
    assert jnp.allclose(out_fp32, ref, atol=1e-5, rtol=1e-5), (
        f"fp32 max abs err {err32}")

    # bf16-MXU path: compare against the reference evaluated on bf16-rounded
    # operands (isolates the intended precision change of the fast path).
    qb16 = q.astype(jnp.bfloat16).astype(jnp.float32)
    kb16 = k.astype(jnp.bfloat16).astype(jnp.float32)
    vb16 = v.astype(jnp.bfloat16).astype(jnp.float32)
    ref_bf16 = _reference(qb16, kb16, vb16, block_size)
    out_bf16 = jax.block_until_ready(
        diag_attention(q, k, v, block_size=block_size, precision="bf16"))
    errb = float(jnp.max(jnp.abs(out_bf16 - ref_bf16)))
    assert jnp.allclose(out_bf16, ref_bf16, atol=5e-2, rtol=5e-2), (
        f"bf16 max abs err {errb}")

    print("KERNEL_OK")
</pallas_src>

<mosaic_0001>
module attributes {stable_mosaic.version = 11 : i64} {
  func.func @_tail_mean_kernel(%arg0: i32, %arg1: memref<1x16x8xf32, #tpu.memory_space<vmem>>, %arg2: memref<1x1x8xf32, #tpu.memory_space<vmem>>) attributes {dimension_semantics = [#tpu.dimension_semantics<parallel>], iteration_bounds = array<i64: 4>, scalar_prefetch = 0 : i64, scratch_operands = 0 : i64, tpu.core_type = #tpu.core_type<tc>, window_params = [{transform_indices = @transform_0, window_bounds = array<i64: 1, 16, 8>}, {transform_indices = @transform_1, window_bounds = array<i64: 1, 1, 8>}]} {
    %c0 = arith.constant 0 : index
    %c0_0 = arith.constant 0 : index
    %c0_1 = arith.constant 0 : index
    %0 = vector.load %arg1[%c0, %c0_0, %c0_1] : memref<1x16x8xf32, #tpu.memory_space<vmem>>, vector<1x16x8xf32>
    %1 = vector.shape_cast %0 : vector<1x16x8xf32> to vector<16x8xf32>
    %cst = arith.constant dense<0.000000e+00> : vector<8xf32>
    %2 = vector.multi_reduction <add>, %1, %cst [0] : vector<16x8xf32> to vector<8xf32>
    %3 = vector.shape_cast %2 : vector<8xf32> to vector<1x8xf32>
    %cst_2 = arith.constant 6.250000e-02 : f32
    %4 = vector.broadcast %cst_2 : f32 to vector<1x8xf32>
    %5 = arith.mulf %3, %4 : vector<1x8xf32>
    %c0_3 = arith.constant 0 : index
    %c0_4 = arith.constant 0 : index
    %c0_5 = arith.constant 0 : index
    %6 = vector.load %arg2[%c0_3, %c0_4, %c0_5] : memref<1x1x8xf32, #tpu.memory_space<vmem>>, vector<1x1x8xf32>
    %7 = vector.shape_cast %6 : vector<1x1x8xf32> to vector<1x8xf32>
    %8 = vector.shape_cast %5 : vector<1x8xf32> to vector<1x1x8xf32>
    tpu.vector_store %arg2[%c0_3, %c0_4, %c0_5], %8 {strides = array<i32>} : memref<1x1x8xf32, #tpu.memory_space<vmem>>, vector<1x1x8xf32>,
    return
  }
  func.func @transform_0(%arg0: i32) -> (i32, i32, i32) {
    %c0_i32 = arith.constant 0 : i32
    %c0_i32_0 = arith.constant 0 : i32
    %c0_i32_1 = arith.constant 0 : i32
    return %arg0, %c0_i32, %c0_i32_0 : i32, i32, i32
  }
  func.func @transform_1(%arg0: i32) -> (i32, i32, i32) {
    %c0_i32 = arith.constant 0 : i32
    %c0_i32_0 = arith.constant 0 : i32
    %c0_i32_1 = arith.constant 0 : i32
    return %arg0, %c0_i32, %c0_i32_0 : i32, i32, i32
  }
}

module attributes {stable_mosaic.version = 11 : i64} {
  func.func @_diag_block_kernel(%arg0: i32, %arg1: memref<12x5x8xf32, #tpu.memory_space<vmem>>, %arg2: memref<12x5x8xf32, #tpu.memory_space<vmem>>, %arg3: memref<12x5x8xf32, #tpu.memory_space<vmem>>, %arg4: memref<12x5x8xf32, #tpu.memory_space<vmem>>) attributes {dimension_semantics = [#tpu.dimension_semantics<parallel>], iteration_bounds = array<i64: 1>, scalar_prefetch = 0 : i64, scratch_operands = 0 : i64, tpu.core_type = #tpu.core_type<tc>, window_params = [{transform_indices = @transform_0, window_bounds = array<i64: 12, 5, 8>}, {transform_indices = @transform_1, window_bounds = array<i64: 12, 5, 8>}, {transform_indices = @transform_2, window_bounds = array<i64: 12, 5, 8>}, {transform_indices = @transform_3, window_bounds = array<i64: 12, 5, 8>}]} {
    %c0 = arith.constant 0 : index
    %c0_0 = arith.constant 0 : index
    %c0_1 = arith.constant 0 : index
    %0 = vector.load %arg1[%c0, %c0_0, %c0_1] : memref<12x5x8xf32, #tpu.memory_space<vmem>>, vector<12x5x8xf32>
    %c0_2 = arith.constant 0 : index
    %c0_3 = arith.constant 0 : index
    %c0_4 = arith.constant 0 : index
    %1 = vector.load %arg2[%c0_2, %c0_3, %c0_4] : memref<12x5x8xf32, #tpu.memory_space<vmem>>, vector<12x5x8xf32>
    %c0_5 = arith.constant 0 : index
    %c0_6 = arith.constant 0 : index
    %c0_7 = arith.constant 0 : index
    %2 = vector.load %arg3[%c0_5, %c0_6, %c0_7] : memref<12x5x8xf32, #tpu.memory_space<vmem>>, vector<12x5x8xf32>
    "tpu.trace_start"() <{level = 10 : i32, message = "bqd,bkd->bqk"}> : () -> ()
    %cst = arith.constant dense<0.000000e+00> : vector<12x5x5xf32>
    %3 = tpu.matmul %0, %1, %cst {dimension_numbers = #tpu.dot_dimension_numbers<[2], [2], [1], [1], [0, 0, 0, 1, 1, 1], [0], [0]>} : vector<12x5x8xf32>, vector<12x5x8xf32>, vector<12x5x5xf32> -> vector<12x5x5xf32>
    "tpu.trace_stop"() : () -> ()
    %cst_8 = arith.constant dense<0xFF800000> : vector<12x5xf32>
    %4 = vector.multi_reduction <maximumf>, %3, %cst_8 [2] : vector<12x5x5xf32> to vector<12x5xf32>
    %5 = vector.shape_cast %4 : vector<12x5xf32> to vector<12x5x1xf32>
    %6 = vector.broadcast %5 : vector<12x5x1xf32> to vector<12x5x5xf32>
    %7 = arith.subf %3, %6 : vector<12x5x5xf32>
    %8 = math.exp %7 : vector<12x5x5xf32>
    %cst_9 = arith.constant dense<0.000000e+00> : vector<12x5xf32>
    %9 = vector.multi_reduction <add>, %8, %cst_9 [2] : vector<12x5x5xf32> to vector<12x5xf32>
    %10 = vector.shape_cast %9 : vector<12x5xf32> to vector<12x5x1xf32>
    %11 = vector.broadcast %10 : vector<12x5x1xf32> to vector<12x5x5xf32>
    %12 = arith.divf %8, %11 : vector<12x5x5xf32>
    "tpu.trace_start"() <{level = 10 : i32, message = "bqk,bkd->bqd"}> : () -> ()
    %cst_10 = arith.constant dense<0.000000e+00> : vector<12x5x8xf32>
    %13 = tpu.matmul %12, %2, %cst_10 {dimension_numbers = #tpu.dot_dimension_numbers<[2], [1], [1], [2], [0, 0, 0, 1, 1, 2], [0], [0]>} : vector<12x5x5xf32>, vector<12x5x8xf32>, vector<12x5x8xf32> -> vector<12x5x8xf32>
    "tpu.trace_stop"() : () -> ()
    %c0_11 = arith.constant 0 : index
    %c0_12 = arith.constant 0 : index
    %c0_13 = arith.constant 0 : index
    %14 = vector.load %arg4[%c0_11, %c0_12, %c0_13] : memref<12x5x8xf32, #tpu.memory_space<vmem>>, vector<12x5x8xf32>
    tpu.vector_store %arg4[%c0_11, %c0_12, %c0_13], %13 {strides = array<i32>} : memref<12x5x8xf32, #tpu.memory_space<vmem>>, vector<12x5x8xf32>,
    return
  }
  func.func @transform_0(%arg0: i32) -> (i32, i32, i32) {
    %c0_i32 = arith.constant 0 : i32
    %c0_i32_0 = arith.constant 0 : i32
    %c0_i32_1 = arith.constant 0 : i32
    return %arg0, %c0_i32, %c0_i32_0 : i32, i32, i32
  }
  func.func @transform_1(%arg0: i32) -> (i32, i32, i32) {
    %c0_i32 = arith.constant 0 : i32
    %c0_i32_0 = arith.constant 0 : i32
    %c0_i32_1 = arith.constant 0 : i32
    return %arg0, %c0_i32, %c0_i32_0 : i32, i32, i32
  }
  func.func @transform_2(%arg0: i32) -> (i32, i32, i32) {
    %c0_i32 = arith.constant 0 : i32
    %c0_i32_0 = arith.constant 0 : i32
    %c0_i32_1 = arith.constant 0 : i32
    return %arg0, %c0_i32, %c0_i32_0 : i32, i32, i32
  }
  func.func @transform_3(%arg0: i32) -> (i32, i32, i32) {
    %c0_i32 = arith.constant 0 : i32
    %c0_i32_0 = arith.constant 0 : i32
    %c0_i32_1 = arith.constant 0 : i32
    return %arg0, %c0_i32, %c0_i32_0 : i32, i32, i32
  }
}

</mosaic_0001>

<llo_original>
// kernel: diag_attention.3
$region0: #{diag_attention.3}
  #allocation0 [shape = 'u32[]', space=smem, size = 0x4, offset = 0x4, fixed_abs, tag = 'smem constant byte address 0x4 - core index']
  #allocation1 [shape = 'u32[72,128]{1,0:T(1,128)}', space=vmem, size = 0x9000, scoped, tag = 'internal scratch']
  %s0 = inlined_call_operand.vmem [shape: f32[4,16,8], index: 0, kind: input, shape index: {}]
  %s1 = inlined_call_operand.vmem [shape: f32[4,1,8], index: 1, kind: output, shape index: {}]
  %s2 = sld [smem:[#allocation0]]
  $region37: #{diag_attention.3} parent=0
    _
  %s4 = ssub.s32 1, %s2
  %s5 = scalar_select 0, %s4, %s2
  loop: start=0, step=1, limit=6
  $region2: #{diag_attention.3} parent=0 // loop_pre_header
    _
  $region3: #{diag_attention.3} parent=0 // loop_header
    %s7 = sphi 0, %s11
    %p8 = scmp.ge.s32.totalorder %s7, 6
    %s17 = sphi 0, %s19
    %s20 = sphi 0, %s17
    %s21 = sphi 0, %s20
    %s37 = sphi 0, %s21
    %s43 = sphi 0, %s45
    %s46 = sphi 0, %s43
    %s47 = sphi 0, %s46
    %s63 = sphi 0, %s47
  $region4: #{diag_attention.3} parent=0 // loop_header_branch
    %10 = sbr.rel (%p8) target = $region8
  $region5: #{diag_attention.3} parent=0 // loop_body
    %s12 = ssub.s32 %s7, 1
    %s13 = ssub.s32 %s7, 2
    %s14 = sadd.s32 %s7, 1
    %s15 = ssub.s32 %s7, %s14
    %p16 = scmp.eq.s32.totalorder %s15, 0
    %s18 = sadd.s32 %s17, 1
    %s19 = scalar_select %p16, %s17, %s18
    %p22 = pneg %p16
    %p23 = scmp.eq.s32.totalorder %s7, 3
    %p24 = por %p22, %p23
    %p25 = scmp.ne.s32.totalorder %s17, %s20
    %p26 = scmp.eq.s32.totalorder %s7, 0
    %p27 = por %p25, %p26
    %p28 = scmp.ne.s32.totalorder %s17, %s20
    %p29 = scmp.eq.s32.totalorder %s12, 3
    %p30 = por %p28, %p29
    %p31 = scmp.ne.s32.totalorder %s20, %s21
    %p32 = scmp.eq.s32.totalorder %s12, 0
    %p33 = por %p31, %p32
    %p34 = scmp.ne.s32.totalorder %s20, %s21
    %p35 = scmp.eq.s32.totalorder %s13, 3
    %p36 = por %p34, %p35
    %p38 = scmp.ne.s32.totalorder %s21, %s37
    %p39 = scmp.eq.s32.totalorder %s13, 0
    %p40 = por %p38, %p39
    %s41 = ssub.s32 %s7, %s14
    %p42 = scmp.eq.s32.totalorder %s41, 0
    %s44 = sadd.s32 %s43, 1
    %s45 = scalar_select %p42, %s43, %s44
    %p48 = pneg %p42
    %p49 = scmp.eq.s32.totalorder %s7, 3
    %p50 = por %p48, %p49
    %p51 = scmp.ne.s32.totalorder %s43, %s46
    %p52 = scmp.eq.s32.totalorder %s7, 0
    %p53 = por %p51, %p52
    %p54 = scmp.ne.s32.totalorder %s43, %s46
    %p55 = scmp.eq.s32.totalorder %s12, 3
    %p56 = por %p54, %p55
    %p57 = scmp.ne.s32.totalorder %s46, %s47
    %p58 = scmp.eq.s32.totalorder %s12, 0
    %p59 = por %p57, %p58
    %p60 = scmp.ne.s32.totalorder %s46, %s47
    %p61 = scmp.eq.s32.totalorder %s13, 3
    %p62 = por %p60, %p61
    %p64 = scmp.ne.s32.totalorder %s47, %s63
    %p65 = scmp.eq.s32.totalorder %s13, 0
    %p66 = por %p64, %p65
    %p67 = scmp.le.s32.totalorder 1, %s7
    %p68 = scmp.lt.s32.totalorder %s7, 5
    %p69 = pnand %p67, %p68
    %p70 = pneg %p69
    // Predicated region
    $region9: #{diag_attention.3} parent=5 // pred_check
      _
    $region10: #{diag_attention.3} parent=5 // pred_check_branch
      %72 = sbr.rel (%p69) target = $region12
    $region11: #{diag_attention.3} parent=5 // pred_region
      %s73 = ssub.s32 %s7, 1
    $region12: #{diag_attention.3} parent=5 // pred_fallthru
      _
    %p74 = scmp.lt.s32.totalorder %s7, 4
    // Predicated region
    $region13: #{diag_attention.3} parent=5 // pred_check
      %p75 = pneg %p74
    $region14: #{diag_attention.3} parent=5 // pred_check_branch
      %77 = sbr.rel (%p75) target = $region16
    $region15: #{diag_attention.3} parent=5 // pred_region
      // Predicated region
      $region17: #{diag_attention.3} parent=15 // pred_check
        %p78 = pneg %p27
      $region18: #{diag_attention.3} parent=15 // pred_check_branch
        %80 = sbr.rel (%p78) target = $region20
      $region19: #{diag_attention.3} parent=15 // pred_region
        %p81 = scmp.lt.s32.totalorder %s7, 3
        %s82 = scalar_select %p81, %s7, 3
        %s83 = smul.addr %s82, 2
        %s84 = smul.addr %s83, 8
        %s85 = scalar_lea.vmem %s0, %s84
      $region20: #{diag_attention.3} parent=15 // pred_fallthru
        _
    $region16: #{diag_attention.3} parent=5 // pred_fallthru
      _
    %p86 = scmp.le.s32.totalorder 1, %s7
    %p87 = scmp.lt.s32.totalorder %s7, 5
    %p88 = pnand %p86, %p87
    %p89 = pneg %p88
    // Predicated region
    $region21: #{diag_attention.3} parent=5 // pred_check
      _
    $region22: #{diag_attention.3} parent=5 // pred_check_branch
      %91 = sbr.rel (%p88) target = $region24
    $region23: #{diag_attention.3} parent=5 // pred_region
      %s92 = ssub.s32 %s7, 1
      %p93 = scmp.lt.s32.totalorder %s12, 3
      %s94 = scalar_select %p93, %s12, 3
      %s95 = smul.addr %s94, 2
      %s96 = smul.addr %s95, 8
      %s97 = scalar_lea.vmem %s0, %s96
      %p98 = pneg %p33
      %p99 = pneg %p30
      %p100 = pneg %p59
      %p101 = pneg %p56
      %p102 = scmp.lt.s32.totalorder %s12, 3
      %s103 = scalar_select %p102, %s12, 3
      %s104 = scalar_lea.vmem %s1, %s103
      %p105 = scmp.lt.s32.totalorder %s12, 3
      %s106 = scalar_select %p105, %s12, 3
      %s107 = smul.addr %s106, 2
      %s108 = smul.addr %s107, 8
      %s109 = scalar_lea.vmem %s0, %s108
      %p110 = scmp.lt.s32.totalorder %s12, 3
      %s111 = scalar_select %p110, %s12, 3
      %s112 = scalar_lea.vmem %s1, %s111
      %v113 = vld [vmem:[%s109] sm:$0xff]
      %v114 = vld [vmem:[%s109 + $0x8] sm:$0xff]
      %vm115 = vcmask 64512
      %v116 = vsel %vm115, %v113, 0.0
      %v117 = vsel %vm115, %v114, 0.0
      %v118 = vadd.f32 %v116, %v117
      %v119 = vrot.slane %v118, 4
      %v120 = vadd.f32 %v118, %v119
      %v121 = vrot.slane %v120, 2
      %v122 = vadd.f32 %v120, %v121
      %v123 = vrot.slane %v122, 1
      %v124 = vadd.f32 %v122, %v123
      %v125 = vmul.f32 %v124, 0.0625
      %vm126 = vcmask 57344
      %127 = vst.msk [vmem:[%s112] sm:$0x1] %vm126, %v125
      %p128 = scmp.lt.s32.totalorder %s12, 3
      %s129 = scalar_select %p128, %s12, 3
      %s130 = scalar_lea.vmem %s1, %s129
      // Predicated region
      $region25: #{diag_attention.3} parent=23 // pred_check
        %p131 = pneg %p56
      $region26: #{diag_attention.3} parent=23 // pred_check_branch
        %133 = sbr.rel (%p131) target = $region28
      $region27: #{diag_attention.3} parent=23 // pred_region
        _
      $region28: #{diag_attention.3} parent=23 // pred_fallthru
        _
    $region24: #{diag_attention.3} parent=5 // pred_fallthru
      _
    %p134 = scmp.le.s32.totalorder 2, %s7
    // Predicated region
    $region29: #{diag_attention.3} parent=5 // pred_check
      %p135 = pneg %p134
    $region30: #{diag_attention.3} parent=5 // pred_check_branch
      %137 = sbr.rel (%p135) target = $region32
    $region31: #{diag_attention.3} parent=5 // pred_region
      %s138 = ssub.s32 %s7, 2
      // Predicated region
      $region33: #{diag_attention.3} parent=31 // pred_check
        %p139 = pneg %p62
      $region34: #{diag_attention.3} parent=31 // pred_check_branch
        %141 = sbr.rel (%p139) target = $region36
      $region35: #{diag_attention.3} parent=31 // pred_region
        %p142 = scmp.lt.s32.totalorder %s13, 3
        %s143 = scalar_select %p142, %s13, 3
        %s144 = scalar_lea.vmem %s1, %s143
      $region36: #{diag_attention.3} parent=31 // pred_fallthru
        _
    $region32: #{diag_attention.3} parent=5 // pred_fallthru
      _
  $region6: #{diag_attention.3} parent=0 // loop_footer
    %s11 = sadd.s32 1, %s7
  $region7: #{diag_attention.3} parent=0 // loop_footer_branch
    %6 = sbr.rel target = $region3
  $region8: #{diag_attention.3} parent=0 // loop_exit
    _

// kernel: diag_attention.2
$region0: #{diag_attention.2}
  #allocation0 [shape = 'u32[]', space=smem, size = 0x4, offset = 0x4, fixed_abs, tag = 'smem constant byte address 0x4 - core index']
  #allocation1 [shape = 'u32[72,128]{1,0:T(1,128)}', space=vmem, size = 0x9000, scoped, tag = 'internal scratch']
  %s0 = inlined_call_operand.vmem [shape: f32[12,5,8], index: 0, kind: input, shape index: {}]
  %s1 = inlined_call_operand.vmem [shape: f32[12,5,8], index: 1, kind: input, shape index: {}]
  %s2 = inlined_call_operand.vmem [shape: f32[12,5,8], index: 2, kind: input, shape index: {}]
  %s3 = inlined_call_operand.vmem [shape: f32[12,5,8], index: 3, kind: output, shape index: {}]
  %s4 = sld [smem:[#allocation0]]
  $region22: #{diag_attention.2} parent=0
    _
  %s6 = ssub.s32 1, %s4
  %s7 = scalar_select 0, %s6, %s4
  // Predicated region
  $region2: #{diag_attention.2} parent=0 // pred_check
    _
  $region3: #{diag_attention.2} parent=0 // pred_check_branch
    %9 = sbr.rel (0) target = $region5
  $region4: #{diag_attention.2} parent=0 // pred_region
    _
  $region5: #{diag_attention.2} parent=0 // pred_fallthru
    _
  // Predicated region
  $region6: #{diag_attention.2} parent=0 // pred_check
    _
  $region7: #{diag_attention.2} parent=0 // pred_check_branch
    %11 = sbr.rel (0) target = $region9
  $region8: #{diag_attention.2} parent=0 // pred_region
    _
  $region9: #{diag_attention.2} parent=0 // pred_fallthru
    _
  // Predicated region
  $region10: #{diag_attention.2} parent=0 // pred_check
    _
  $region11: #{diag_attention.2} parent=0 // pred_check_branch
    %13 = sbr.rel (0) target = $region13
  $region12: #{diag_attention.2} parent=0 // pred_region
    _
  $region13: #{diag_attention.2} parent=0 // pred_fallthru
    _
  %v14 = vld [vmem:[%s0] sm:$0x1f]
  %v15 = vld [vmem:[%s0 + $0x8] sm:$0x1f]
  %v16 = vld [vmem:[%s0 + $0x10] sm:$0x1f]
  %v17 = vld [vmem:[%s0 + $0x18] sm:$0x1f]
  %v18 = vld [vmem:[%s0 + $0x20] sm:$0x1f]
  %v19 = vld [vmem:[%s0 + $0x28] sm:$0x1f]
  %v20 = vld [vmem:[%s0 + $0x30] sm:$0x1f]
  %v21 = vld [vmem:[%s0 + $0x38] sm:$0x1f]
  %v22 = vld [vmem:[%s0 + $0x40] sm:$0x1f]
  %v23 = vld [vmem:[%s0 + $0x48] sm:$0x1f]
  %v24 = vld [vmem:[%s0 + $0x50] sm:$0x1f]
  %v25 = vld [vmem:[%s0 + $0x58] sm:$0x1f]
  %v26 = vld [vmem:[%s1] sm:$0x1f]
  %v27 = vld [vmem:[%s1 + $0x8] sm:$0x1f]
  %v28 = vld [vmem:[%s1 + $0x10] sm:$0x1f]
  %v29 = vld [vmem:[%s1 + $0x18] sm:$0x1f]
  %v30 = vld [vmem:[%s1 + $0x20] sm:$0x1f]
  %v31 = vld [vmem:[%s1 + $0x28] sm:$0x1f]
  %v32 = vld [vmem:[%s1 + $0x30] sm:$0x1f]
  %v33 = vld [vmem:[%s1 + $0x38] sm:$0x1f]
  %v34 = vld [vmem:[%s1 + $0x40] sm:$0x1f]
  %v35 = vld [vmem:[%s1 + $0x48] sm:$0x1f]
  %v36 = vld [vmem:[%s1 + $0x50] sm:$0x1f]
  %v37 = vld [vmem:[%s1 + $0x58] sm:$0x1f]
  %v38 = vld [vmem:[%s2] sm:$0x1f]
  %v39 = vld [vmem:[%s2 + $0x8] sm:$0x1f]
  %v40 = vld [vmem:[%s2 + $0x10] sm:$0x1f]
  %v41 = vld [vmem:[%s2 + $0x18] sm:$0x1f]
  %v42 = vld [vmem:[%s2 + $0x20] sm:$0x1f]
  %v43 = vld [vmem:[%s2 + $0x28] sm:$0x1f]
  %v44 = vld [vmem:[%s2 + $0x30] sm:$0x1f]
  %v45 = vld [vmem:[%s2 + $0x38] sm:$0x1f]
  %v46 = vld [vmem:[%s2 + $0x40] sm:$0x1f]
  %v47 = vld [vmem:[%s2 + $0x48] sm:$0x1f]
  %v48 = vld [vmem:[%s2 + $0x50] sm:$0x1f]
  %v49 = vld [vmem:[%s2 + $0x58] sm:$0x1f]
  %vm50 = vcmask 64512
  %v52 = vsel %vm50, %v14, 0
  %v55 = vsel %vm50, %v26, 0
  %57 = vmatpush.xpose.msra.mxu0 0.0
  %58 = vmatpush.xpose.msra.mxu0 0.0
  %59 = vmatpush.xpose.msra.mxu0 0.0
  %60 = vmatpush.xpose.msra.mxu0 0.0
  %61 = vmatpush.xpose.msra.mxu0 0.0
  %62 = vmatpush.xpose.msra.mxu0 0.0
  %63 = vmatpush.xpose.msra.mxu0 0.0
  %64 = vmatpush.xpose.msra.mxu0 0.0
  %65 = vmatpush.xpose.msra.mxu0 0.0
  %66 = vmatpush.xpose.msra.mxu0 0.0
  %67 = vmatpush.xpose.msra.mxu0 0.0
  %68 = vmatpush.xpose.msra.mxu0 0.0
  %69 = vmatpush.xpose.msra.mxu0 0.0
  %70 = vmatpush.xpose.msra.mxu0 0.0
  %71 = vmatpush.xpose.msra.mxu0 0.0
  %72 = vmatpush.xpose.msra.mxu0 %v55
  %73 = vmatmul.f32.gmra.mxu0 %v52
  %v74 = vpop.f32.mrf.mxu0
  %v75 = vadd.f32 0.0, %v74
  %76 = vdwg.mxu0
  %v78 = vsel %vm50, %v15, 0
  %v81 = vsel %vm50, %v27, 0
  %83 = vmatpush.xpose.msra.mxu0 0.0
  %84 = vmatpush.xpose.msra.mxu0 0.0
  %85 = vmatpush.xpose.msra.mxu0 0.0
  %86 = vmatpush.xpose.msra.mxu0 0.0
  %87 = vmatpush.xpose.msra.mxu0 0.0
  %88 = vmatpush.xpose.msra.mxu0 0.0
  %89 = vmatpush.xpose.msra.mxu0 0.0
  %90 = vmatpush.xpose.msra.mxu0 0.0
  %91 = vmatpush.xpose.msra.mxu0 0.0
  %92 = vmatpush.xpose.msra.mxu0 0.0
  %93 = vmatpush.xpose.msra.mxu0 0.0
  %94 = vmatpush.xpose.msra.mxu0 0.0
  %95 = vmatpush.xpose.msra.mxu0 0.0
  %96 = vmatpush.xpose.msra.mxu0 0.0
  %97 = vmatpush.xpose.msra.mxu0 0.0
  %98 = vmatpush.xpose.msra.mxu0 %v81
  %99 = vmatmul.f32.gmra.mxu0 %v78
  %v100 = vpop.f32.mrf.mxu0
  %v101 = vadd.f32 0.0, %v100
  %102 = vdwg.mxu0
  %v104 = vsel %vm50, %v16, 0
  %v107 = vsel %vm50, %v28, 0
  %109 = vmatpush.xpose.msra.mxu0 0.0
  %110 = vmatpush.xpose.msra.mxu0 0.0
  %111 = vmatpush.xpose.msra.mxu0 0.0
  %112 = vmatpush.xpose.msra.mxu0 0.0
  %113 = vmatpush.xpose.msra.mxu0 0.0
  %114 = vmatpush.xpose.msra.mxu0 0.0
  %115 = vmatpush.xpose.msra.mxu0 0.0
  %116 = vmatpush.xpose.msra.mxu0 0.0
  %117 = vmatpush.xpose.msra.mxu0 0.0
  %118 = vmatpush.xpose.msra.mxu0 0.0
  %119 = vmatpush.xpose.msra.mxu0 0.0
  %120 = vmatpush.xpose.msra.mxu0 0.0
  %121 = vmatpush.xpose.msra.mxu0 0.0
  %122 = vmatpush.xpose.msra.mxu0 0.0
  %123 = vmatpush.xpose.msra.mxu0 0.0
  %124 = vmatpush.xpose.msra.mxu0 %v107
  %125 = vmatmul.f32.gmra.mxu0 %v104
  %v126 = vpop.f32.mrf.mxu0
  %v127 = vadd.f32 0.0, %v126
  %128 = vdwg.mxu0
  %v130 = vsel %vm50, %v17, 0
  %v133 = vsel %vm50, %v29, 0
  %135 = vmatpush.xpose.msra.mxu0 0.0
  %136 = vmatpush.xpose.msra.mxu0 0.0
  %137 = vmatpush.xpose.msra.mxu0 0.0
  %138 = vmatpush.xpose.msra.mxu0 0.0
  %139 = vmatpush.xpose.msra.mxu0 0.0
  %140 = vmatpush.xpose.msra.mxu0 0.0
  %141 = vmatpush.xpose.msra.mxu0 0.0
  %142 = vmatpush.xpose.msra.mxu0 0.0
  %143 = vmatpush.xpose.msra.mxu0 0.0
  %144 = vmatpush.xpose.msra.mxu0 0.0
  %145 = vmatpush.xpose.msra.mxu0 0.0
  %146 = vmatpush.xpose.msra.mxu0 0.0
  %147 = vmatpush.xpose.msra.mxu0 0.0
  %148 = vmatpush.xpose.msra.mxu0 0.0
  %149 = vmatpush.xpose.msra.mxu0 0.0
  %150 = vmatpush.xpose.msra.mxu0 %v133
  %151 = vmatmul.f32.gmra.mxu0 %v130
  %v152 = vpop.f32.mrf.mxu0
  %v153 = vadd.f32 0.0, %v152
  %154 = vdwg.mxu0
  %v156 = vsel %vm50, %v18, 0
  %v159 = vsel %vm50, %v30, 0
  %161 = vmatpush.xpose.msra.mxu0 0.0
  %162 = vmatpush.xpose.msra.mxu0 0.0
  %163 = vmatpush.xpose.msra.mxu0 0.0
  %164 = vmatpush.xpose.msra.mxu0 0.0
  %165 = vmatpush.xpose.msra.mxu0 0.0
  %166 = vmatpush.xpose.msra.mxu0 0.0
  %167 = vmatpush.xpose.msra.mxu0 0.0
  %168 = vmatpush.xpose.msra.mxu0 0.0
  %169 = vmatpush.xpose.msra.mxu0 0.0
  %170 = vmatpush.xpose.msra.mxu0 0.0
  %171 = vmatpush.xpose.msra.mxu0 0.0
  %172 = vmatpush.xpose.msra.mxu0 0.0
  %173 = vmatpush.xpose.msra.mxu0 0.0
  %174 = vmatpush.xpose.msra.mxu0 0.0
  %175 = vmatpush.xpose.msra.mxu0 0.0
  %176 = vmatpush.xpose.msra.mxu0 %v159
  %177 = vmatmul.f32.gmra.mxu0 %v156
  %v178 = vpop.f32.mrf.mxu0
  %v179 = vadd.f32 0.0, %v178
  %180 = vdwg.mxu0
  %v182 = vsel %vm50, %v19, 0
  %v185 = vsel %vm50, %v31, 0
  %187 = vmatpush.xpose.msra.mxu0 0.0
  %188 = vmatpush.xpose.msra.mxu0 0.0
  %189 = vmatpush.xpose.msra.mxu0 0.0
  %190 = vmatpush.xpose.msra.mxu0 0.0
  %191 = vmatpush.xpose.msra.mxu0 0.0
  %192 = vmatpush.xpose.msra.mxu0 0.0
  %193 = vmatpush.xpose.msra.mxu0 0.0
  %194 = vmatpush.xpose.msra.mxu0 0.0
  %195 = vmatpush.xpose.msra.mxu0 0.0
  %196 = vmatpush.xpose.msra.mxu0 0.0
  %197 = vmatpush.xpose.msra.mxu0 0.0
  %198 = vmatpush.xpose.msra.mxu0 0.0
  %199 = vmatpush.xpose.msra.mxu0 0.0
  %200 = vmatpush.xpose.msra.mxu0 0.0
  %201 = vmatpush.xpose.msra.mxu0 0.0
  %202 = vmatpush.xpose.msra.mxu0 %v185
  %203 = vmatmul.f32.gmra.mxu0 %v182
  %v204 = vpop.f32.mrf.mxu0
  %v205 = vadd.f32 0.0, %v204
  %206 = vdwg.mxu0
  %v208 = vsel %vm50, %v20, 0
  %v211 = vsel %vm50, %v32, 0
  %213 = vmatpush.xpose.msra.mxu0 0.0
  %214 = vmatpush.xpose.msra.mxu0 0.0
  %215 = vmatpush.xpose.msra.mxu0 0.0
  %216 = vmatpush.xpose.msra.mxu0 0.0
  %217 = vmatpush.xpose.msra.mxu0 0.0
  %218 = vmatpush.xpose.msra.mxu0 0.0
  %219 = vmatpush.xpose.msra.mxu0 0.0
  %220 = vmatpush.xpose.msra.mxu0 0.0
  %221 = vmatpush.xpose.msra.mxu0 0.0
  %222 = vmatpush.xpose.msra.mxu0 0.0
  %223 = vmatpush.xpose.msra.mxu0 0.0
  %224 = vmatpush.xpose.msra.mxu0 0.0
  %225 = vmatpush.xpose.msra.mxu0 0.0
  %226 = vmatpush.xpose.msra.mxu0 0.0
  %227 = vmatpush.xpose.msra.mxu0 0.0
  %228 = vmatpush.xpose.msra.mxu0 %v211
  %229 = vmatmul.f32.gmra.mxu0 %v208
  %v230 = vpop.f32.mrf.mxu0
  %v231 = vadd.f32 0.0, %v230
  %232 = vdwg.mxu0
  %v234 = vsel %vm50, %v21, 0
  %v237 = vsel %vm50, %v33, 0
  %239 = vmatpush.xpose.msra.mxu0 0.0
  %240 = vmatpush.xpose.msra.mxu0 0.0
  %241 = vmatpush.xpose.msra.mxu0 0.0
  %242 = vmatpush.xpose.msra.mxu0 0.0
  %243 = vmatpush.xpose.msra.mxu0 0.0
  %244 = vmatpush.xpose.msra.mxu0 0.0
  %245 = vmatpush.xpose.msra.mxu0 0.0
  %246 = vmatpush.xpose.msra.mxu0 0.0
  %247 = vmatpush.xpose.msra.mxu0 0.0
  %248 = vmatpush.xpose.msra.mxu0 0.0
  %249 = vmatpush.xpose.msra.mxu0 0.0
  %250 = vmatpush.xpose.msra.mxu0 0.0
  %251 = vmatpush.xpose.msra.mxu0 0.0
  %252 = vmatpush.xpose.msra.mxu0 0.0
  %253 = vmatpush.xpose.msra.mxu0 0.0
  %254 = vmatpush.xpose.msra.mxu0 %v237
  %255 = vmatmul.f32.gmra.mxu0 %v234
  %v256 = vpop.f32.mrf.mxu0
  %v257 = vadd.f32 0.0, %v256
  %258 = vdwg.mxu0
  %v260 = vsel %vm50, %v22, 0
  %v263 = vsel %vm50, %v34, 0
  %265 = vmatpush.xpose.msra.mxu0 0.0
  %266 = vmatpush.xpose.msra.mxu0 0.0
  %267 = vmatpush.xpose.msra.mxu0 0.0
  %268 = vmatpush.xpose.msra.mxu0 0.0
  %269 = vmatpush.xpose.msra.mxu0 0.0
  %270 = vmatpush.xpose.msra.mxu0 0.0
  %271 = vmatpush.xpose.msra.mxu0 0.0
  %272 = vmatpush.xpose.msra.mxu0 0.0
  %273 = vmatpush.xpose.msra.mxu0 0.0
  %274 = vmatpush.xpose.msra.mxu0 0.0
  %275 = vmatpush.xpose.msra.mxu0 0.0
  %276 = vmatpush.xpose.msra.mxu0 0.0
  %277 = vmatpush.xpose.msra.mxu0 0.0
  %278 = vmatpush.xpose.msra.mxu0 0.0
  %279 = vmatpush.xpose.msra.mxu0 0.0
  %280 = vmatpush.xpose.msra.mxu0 %v263
  %281 = vmatmul.f32.gmra.mxu0 %v260
  %v282 = vpop.f32.mrf.mxu0
  %v283 = vadd.f32 0.0, %v282
  %284 = vdwg.mxu0
  %v286 = vsel %vm50, %v23, 0
  %v289 = vsel %vm50, %v35, 0
  %291 = vmatpush.xpose.msra.mxu0 0.0
  %292 = vmatpush.xpose.msra.mxu0 0.0
  %293 = vmatpush.xpose.msra.mxu0 0.0
  %294 = vmatpush.xpose.msra.mxu0 0.0
  %295 = vmatpush.xpose.msra.mxu0 0.0
  %296 = vmatpush.xpose.msra.mxu0 0.0
  %297 = vmatpush.xpose.msra.mxu0 0.0
  %298 = vmatpush.xpose.msra.mxu0 0.0
  %299 = vmatpush.xpose.msra.mxu0 0.0
  %300 = vmatpush.xpose.msra.mxu0 0.0
  %301 = vmatpush.xpose.msra.mxu0 0.0
  %302 = vmatpush.xpose.msra.mxu0 0.0
  %303 = vmatpush.xpose.msra.mxu0 0.0
  %304 = vmatpush.xpose.msra.mxu0 0.0
  %305 = vmatpush.xpose.msra.mxu0 0.0
  %306 = vmatpush.xpose.msra.mxu0 %v289
  %307 = vmatmul.f32.gmra.mxu0 %v286
  %v308 = vpop.f32.mrf.mxu0
  %v309 = vadd.f32 0.0, %v308
  %310 = vdwg.mxu0
  %v312 = vsel %vm50, %v24, 0
  %v315 = vsel %vm50, %v36, 0
  %317 = vmatpush.xpose.msra.mxu0 0.0
  %318 = vmatpush.xpose.msra.mxu0 0.0
  %319 = vmatpush.xpose.msra.mxu0 0.0
  %320 = vmatpush.xpose.msra.mxu0 0.0
  %321 = vmatpush.xpose.msra.mxu0 0.0
  %322 = vmatpush.xpose.msra.mxu0 0.0
  %323 = vmatpush.xpose.msra.mxu0 0.0
  %324 = vmatpush.xpose.msra.mxu0 0.0
  %325 = vmatpush.xpose.msra.mxu0 0.0
  %326 = vmatpush.xpose.msra.mxu0 0.0
  %327 = vmatpush.xpose.msra.mxu0 0.0
  %328 = vmatpush.xpose.msra.mxu0 0.0
  %329 = vmatpush.xpose.msra.mxu0 0.0
  %330 = vmatpush.xpose.msra.mxu0 0.0
  %331 = vmatpush.xpose.msra.mxu0 0.0
  %332 = vmatpush.xpose.msra.mxu0 %v315
  %333 = vmatmul.f32.gmra.mxu0 %v312
  %v334 = vpop.f32.mrf.mxu0
  %v335 = vadd.f32 0.0, %v334
  %336 = vdwg.mxu0
  %v338 = vsel %vm50, %v25, 0
  %v341 = vsel %vm50, %v37, 0
  %343 = vmatpush.xpose.msra.mxu0 0.0
  %344 = vmatpush.xpose.msra.mxu0 0.0
  %345 = vmatpush.xpose.msra.mxu0 0.0
  %346 = vmatpush.xpose.msra.mxu0 0.0
  %347 = vmatpush.xpose.msra.mxu0 0.0
  %348 = vmatpush.xpose.msra.mxu0 0.0
  %349 = vmatpush.xpose.msra.mxu0 0.0
  %350 = vmatpush.xpose.msra.mxu0 0.0
  %351 = vmatpush.xpose.msra.mxu0 0.0
  %352 = vmatpush.xpose.msra.mxu0 0.0
  %353 = vmatpush.xpose.msra.mxu0 0.0
  %354 = vmatpush.xpose.msra.mxu0 0.0
  %355 = vmatpush.xpose.msra.mxu0 0.0
  %356 = vmatpush.xpose.msra.mxu0 0.0
  %357 = vmatpush.xpose.msra.mxu0 0.0
  %358 = vmatpush.xpose.msra.mxu0 %v341
  %359 = vmatmul.f32.gmra.mxu0 %v338
  %v360 = vpop.f32.mrf.mxu0
  %v361 = vadd.f32 0.0, %v360
  %362 = vdwg.mxu0
  %vm363 = vcmask 36864
  %v364 = vsel %vm363, %v75, -inf
  %365 = vmax.xlane.f32.xlu0 %v364
  %v366 = vpop.xlane.xlu0 %365
  %v367 = vsel %vm363, %v101, -inf
  %368 = vmax.xlane.f32.xlu0 %v367
  %v369 = vpop.xlane.xlu0 %368
  %v370 = vsel %vm363, %v127, -inf
  %371 = vmax.xlane.f32.xlu0 %v370
  %v372 = vpop.xlane.xlu0 %371
  %v373 = vsel %vm363, %v153, -inf
  %374 = vmax.xlane.f32.xlu0 %v373
  %v375 = vpop.xlane.xlu0 %374
  %v376 = vsel %vm363, %v179, -inf
  %377 = vmax.xlane.f32.xlu0 %v376
  %v378 = vpop.xlane.xlu0 %377
  %v379 = vsel %vm363, %v205, -inf
  %380 = vmax.xlane.f32.xlu0 %v379
  %v381 = vpop.xlane.xlu0 %380
  %v382 = vsel %vm363, %v231, -inf
  %383 = vmax.xlane.f32.xlu0 %v382
  %v384 = vpop.xlane.xlu0 %383
  %v385 = vsel %vm363, %v257, -inf
  %386 = vmax.xlane.f32.xlu0 %v385
  %v387 = vpop.xlane.xlu0 %386
  %v388 = vsel %vm363, %v283, -inf
  %389 = vmax.xlane.f32.xlu0 %v388
  %v390 = vpop.xlane.xlu0 %389
  %v391 = vsel %vm363, %v309, -inf
  %392 = vmax.xlane.f32.xlu0 %v391
  %v393 = vpop.xlane.xlu0 %392
  %v394 = vsel %vm363, %v335, -inf
  %395 = vmax.xlane.f32.xlu0 %v394
  %v396 = vpop.xlane.xlu0 %395
  %v397 = vsel %vm363, %v361, -inf
  %398 = vmax.xlane.f32.xlu0 %v397
  %v399 = vpop.xlane.xlu0 %398
  %v400 = vsub.f32 %v75, %v366
  %v401 = vsub.f32 %v101, %v369
  %v402 = vsub.f32 %v127, %v372
  %v403 = vsub.f32 %v153, %v375
  %v404 = vsub.f32 %v179, %v378
  %v405 = vsub.f32 %v205, %v381
  %v406 = vsub.f32 %v231, %v384
  %v407 = vsub.f32 %v257, %v387
  %v408 = vsub.f32 %v283, %v390
  %v409 = vsub.f32 %v309, %v393
  %v410 = vsub.f32 %v335, %v396
  %v411 = vsub.f32 %v361, %v399
  %v412 = vmul.f32 %v400, 1.442695
  %v413 = vpow.pop %v412
  %v414 = vmul.f32 %v401, 1.442695
  %v415 = vpow.pop %v414
  %v416 = vmul.f32 %v402, 1.442695
  %v417 = vpow.pop %v416
  %v418 = vmul.f32 %v403, 1.442695
  %v419 = vpow.pop %v418
  %v420 = vmul.f32 %v404, 1.442695
  %v421 = vpow.pop %v420
  %v422 = vmul.f32 %v405, 1.442695
  %v423 = vpow.pop %v422
  %v424 = vmul.f32 %v406, 1.442695
  %v425 = vpow.pop %v424
  %v426 = vmul.f32 %v407, 1.442695
  %v427 = vpow.pop %v426
  %v428 = vmul.f32 %v408, 1.442695
  %v429 = vpow.pop %v428
  %v430 = vmul.f32 %v409, 1.442695
  %v431 = vpow.pop %v430
  %v432 = vmul.f32 %v410, 1.442695
  %v433 = vpow.pop %v432
  %v434 = vmul.f32 %v411, 1.442695
  %v435 = vpow.pop %v434
  %v436 = vsel %vm363, %v413, 0.0
  %437 = vadd.xlane.f32.xlu0 %v436
  %v438 = vpop.xlane.xlu0 %437
  %v439 = vsel %vm363, %v415, 0.0
  %440 = vadd.xlane.f32.xlu0 %v439
  %v441 = vpop.xlane.xlu0 %440
  %v442 = vsel %vm363, %v417, 0.0
  %443 = vadd.xlane.f32.xlu0 %v442
  %v444 = vpop.xlane.xlu0 %443
  %v445 = vsel %vm363, %v419, 0.0
  %446 = vadd.xlane.f32.xlu0 %v445
  %v447 = vpop.xlane.xlu0 %446
  %v448 = vsel %vm363, %v421, 0.0
  %449 = vadd.xlane.f32.xlu0 %v448
  %v450 = vpop.xlane.xlu0 %449
  %v451 = vsel %vm363, %v423, 0.0
  %452 = vadd.xlane.f32.xlu0 %v451
  %v453 = vpop.xlane.xlu0 %452
  %v454 = vsel %vm363, %v425, 0.0
  %455 = vadd.xlane.f32.xlu0 %v454
  %v456 = vpop.xlane.xlu0 %455
  %v457 = vsel %vm363, %v427, 0.0
  %458 = vadd.xlane.f32.xlu0 %v457
  %v459 = vpop.xlane.xlu0 %458
  %v460 = vsel %vm363, %v429, 0.0
  %461 = vadd.xlane.f32.xlu0 %v460
  %v462 = vpop.xlane.xlu0 %461
  %v463 = vsel %vm363, %v431, 0.0
  %464 = vadd.xlane.f32.xlu0 %v463
  %v465 = vpop.xlane.xlu0 %464
  %v466 = vsel %vm363, %v433, 0.0
  %467 = vadd.xlane.f32.xlu0 %v466
  %v468 = vpop.xlane.xlu0 %467
  %v469 = vsel %vm363, %v435, 0.0
  %470 = vadd.xlane.f32.xlu0 %v469
  %v471 = vpop.xlane.xlu0 %470
  %v472 = vrcp.pop %v438
  %v473 = vmul.f32 %v438, %v472
  %v474 = vsub.f32 1.0, %v473
  %v475 = vmul.f32 %v472, %v474
  %v476 = vadd.f32 %v472, %v475
  %vm477 = vweird.f32 %v438
  %vm478 = vweird.f32 %v472
  %vm479 = vmor %vm477, %vm478
  %v480 = vsel %vm479, %v472, %v476
  %v481 = vand.u32 2147483647, %v438
  %vm482 = vcmp.eq.f32.partialorder %v481, 8.507059e+37
  %v483 = vand.u32 %v438, 2147483648
  %v484 = vor.u32 1.1754944e-38, %v483
  %v485 = vsel %vm482, %v484, %v480
  %v486 = vmul.f32 %v413, %v485
  %v487 = vrcp.pop %v441
  %v488 = vmul.f32 %v441, %v487
  %v489 = vsub.f32 1.0, %v488
  %v490 = vmul.f32 %v487, %v489
  %v491 = vadd.f32 %v487, %v490
  %vm492 = vweird.f32 %v441
  %vm493 = vweird.f32 %v487
  %vm494 = vmor %vm492, %vm493
  %v495 = vsel %vm494, %v487, %v491
  %v496 = vand.u32 2147483647, %v441
  %vm497 = vcmp.eq.f32.partialorder %v496, 8.507059e+37
  %v498 = vand.u32 %v441, 2147483648
  %v499 = vor.u32 1.1754944e-38, %v498
  %v500 = vsel %vm497, %v499, %v495
  %v501 = vmul.f32 %v415, %v500
  %v502 = vrcp.pop %v444
  %v503 = vmul.f32 %v444, %v502
  %v504 = vsub.f32 1.0, %v503
  %v505 = vmul.f32 %v502, %v504
  %v506 = vadd.f32 %v502, %v505
  %vm507 = vweird.f32 %v444
  %vm508 = vweird.f32 %v502
  %vm509 = vmor %vm507, %vm508
  %v510 = vsel %vm509, %v502, %v506
  %v511 = vand.u32 2147483647, %v444
  %vm512 = vcmp.eq.f32.partialorder %v511, 8.507059e+37
  %v513 = vand.u32 %v444, 2147483648
  %v514 = vor.u32 1.1754944e-38, %v513
  %v515 = vsel %vm512, %v514, %v510
  %v516 = vmul.f32 %v417, %v515
  %v517 = vrcp.pop %v447
  %v518 = vmul.f32 %v447, %v517
  %v519 = vsub.f32 1.0, %v518
  %v520 = vmul.f32 %v517, %v519
  %v521 = vadd.f32 %v517, %v520
  %vm522 = vweird.f32 %v447
  %vm523 = vweird.f32 %v517
  %vm524 = vmor %vm522, %vm523
  %v525 = vsel %vm524, %v517, %v521
  %v526 = vand.u32 2147483647, %v447
  %vm527 = vcmp.eq.f32.partialorder %v526, 8.507059e+37
  %v528 = vand.u32 %v447, 2147483648
  %v529 = vor.u32 1.1754944e-38, %v528
  %v530 = vsel %vm527, %v529, %v525
  %v531 = vmul.f32 %v419, %v530
  %v532 = vrcp.pop %v450
  %v533 = vmul.f32 %v450, %v532
  %v534 = vsub.f32 1.0, %v533
  %v535 = vmul.f32 %v532, %v534
  %v536 = vadd.f32 %v532, %v535
  %vm537 = vweird.f32 %v450
  %vm538 = vweird.f32 %v532
  %vm539 = vmor %vm537, %vm538
  %v540 = vsel %vm539, %v532, %v536
  %v541 = vand.u32 2147483647, %v450
  %vm542 = vcmp.eq.f32.partialorder %v541, 8.507059e+37
  %v543 = vand.u32 %v450, 2147483648
  %v544 = vor.u32 1.1754944e-38, %v543
  %v545 = vsel %vm542, %v544, %v540
  %v546 = vmul.f32 %v421, %v545
  %v547 = vrcp.pop %v453
  %v548 = vmul.f32 %v453, %v547
  %v549 = vsub.f32 1.0, %v548
  %v550 = vmul.f32 %v547, %v549
  %v551 = vadd.f32 %v547, %v550
  %vm552 = vweird.f32 %v453
  %vm553 = vweird.f32 %v547
  %vm554 = vmor %vm552, %vm553
  %v555 = vsel %vm554, %v547, %v551
  %v556 = vand.u32 2147483647, %v453
  %vm557 = vcmp.eq.f32.partialorder %v556, 8.507059e+37
  %v558 = vand.u32 %v453, 2147483648
  %v559 = vor.u32 1.1754944e-38, %v558
  %v560 = vsel %vm557, %v559, %v555
  %v561 = vmul.f32 %v423, %v560
  %v562 = vrcp.pop %v456
  %v563 = vmul.f32 %v456, %v562
  %v564 = vsub.f32 1.0, %v563
  %v565 = vmul.f32 %v562, %v564
  %v566 = vadd.f32 %v562, %v565
  %vm567 = vweird.f32 %v456
  %vm568 = vweird.f32 %v562
  %vm569 = vmor %vm567, %vm568
  %v570 = vsel %vm569, %v562, %v566
  %v571 = vand.u32 2147483647, %v456
  %vm572 = vcmp.eq.f32.partialorder %v571, 8.507059e+37
  %v573 = vand.u32 %v456, 2147483648
  %v574 = vor.u32 1.1754944e-38, %v573
  %v575 = vsel %vm572, %v574, %v570
  %v576 = vmul.f32 %v425, %v575
  %v577 = vrcp.pop %v459
  %v578 = vmul.f32 %v459, %v577
  %v579 = vsub.f32 1.0, %v578
  %v580 = vmul.f32 %v577, %v579
  %v581 = vadd.f32 %v577, %v580
  %vm582 = vweird.f32 %v459
  %vm583 = vweird.f32 %v577
  %vm584 = vmor %vm582, %vm583
  %v585 = vsel %vm584, %v577, %v581
  %v586 = vand.u32 2147483647, %v459
  %vm587 = vcmp.eq.f32.partialorder %v586, 8.507059e+37
  %v588 = vand.u32 %v459, 2147483648
  %v589 = vor.u32 1.1754944e-38, %v588
  %v590 = vsel %vm587, %v589, %v585
  %v591 = vmul.f32 %v427, %v590
  %v592 = vrcp.pop %v462
  %v593 = vmul.f32 %v462, %v592
  %v594 = vsub.f32 1.0, %v593
  %v595 = vmul.f32 %v592, %v594
  %v596 = vadd.f32 %v592, %v595
  %vm597 = vweird.f32 %v462
  %vm598 = vweird.f32 %v592
  %vm599 = vmor %vm597, %vm598
  %v600 = vsel %vm599, %v592, %v596
  %v601 = vand.u32 2147483647, %v462
  %vm602 = vcmp.eq.f32.partialorder %v601, 8.507059e+37
  %v603 = vand.u32 %v462, 2147483648
  %v604 = vor.u32 1.1754944e-38, %v603
  %v605 = vsel %vm602, %v604, %v600
  %v606 = vmul.f32 %v429, %v605
  %v607 = vrcp.pop %v465
  %v608 = vmul.f32 %v465, %v607
  %v609 = vsub.f32 1.0, %v608
  %v610 = vmul.f32 %v607, %v609
  %v611 = vadd.f32 %v607, %v610
  %vm612 = vweird.f32 %v465
  %vm613 = vweird.f32 %v607
  %vm614 = vmor %vm612, %vm613
  %v615 = vsel %vm614, %v607, %v611
  %v616 = vand.u32 2147483647, %v465
  %vm617 = vcmp.eq.f32.partialorder %v616, 8.507059e+37
  %v618 = vand.u32 %v465, 2147483648
  %v619 = vor.u32 1.1754944e-38, %v618
  %v620 = vsel %vm617, %v619, %v615
  %v621 = vmul.f32 %v431, %v620
  %v622 = vrcp.pop %v468
  %v623 = vmul.f32 %v468, %v622
  %v624 = vsub.f32 1.0, %v623
  %v625 = vmul.f32 %v622, %v624
  %v626 = vadd.f32 %v622, %v625
  %vm627 = vweird.f32 %v468
  %vm628 = vweird.f32 %v622
  %vm629 = vmor %vm627, %vm628
  %v630 = vsel %vm629, %v622, %v626
  %v631 = vand.u32 2147483647, %v468
  %vm632 = vcmp.eq.f32.partialorder %v631, 8.507059e+37
  %v633 = vand.u32 %v468, 2147483648
  %v634 = vor.u32 1.1754944e-38, %v633
  %v635 = vsel %vm632, %v634, %v630
  %v636 = vmul.f32 %v433, %v635
  %v637 = vrcp.pop %v471
  %v638 = vmul.f32 %v471, %v637
  %v639 = vsub.f32 1.0, %v638
  %v640 = vmul.f32 %v637, %v639
  %v641 = vadd.f32 %v637, %v640
  %vm642 = vweird.f32 %v471
  %vm643 = vweird.f32 %v637
  %vm644 = vmor %vm642, %vm643
  %v645 = vsel %vm644, %v637, %v641
  %v646 = vand.u32 2147483647, %v471
  %vm647 = vcmp.eq.f32.partialorder %v646, 8.507059e+37
  %v648 = vand.u32 %v471, 2147483648
  %v649 = vor.u32 1.1754944e-38, %v648
  %v650 = vsel %vm647, %v649, %v645
  %v651 = vmul.f32 %v435, %v650
  %vm652 = vcmask 39936
  %v654 = vsel %vm652, %v486, 0
  %vm656 = vcmask 1044480
  %v658 = vsel %vm656, %v38, 0
  %660 = vmatpush.msra.mxu0 0.0
  %661 = vmatpush.msra.mxu0 0.0
  %662 = vmatpush.msra.mxu0 0.0
  %663 = vmatpush.msra.mxu0 0.0
  %664 = vmatpush.msra.mxu0 0.0
  %665 = vmatpush.msra.mxu0 0.0
  %666 = vmatpush.msra.mxu0 0.0
  %667 = vmatpush.msra.mxu0 0.0
  %668 = vmatpush.msra.mxu0 0.0
  %669 = vmatpush.msra.mxu0 0.0
  %670 = vmatpush.msra.mxu0 0.0
  %671 = vmatpush.msra.mxu0 0.0
  %672 = vmatpush.msra.mxu0 0.0
  %673 = vmatpush.msra.mxu0 0.0
  %674 = vmatpush.msra.mxu0 0.0
  %675 = vmatpush.msra.mxu0 %v658
  %676 = vmatmul.f32.gmra.mxu0 %v654
  %v677 = vpop.f32.mrf.mxu0
  %v678 = vadd.f32 0.0, %v677
  %679 = vdwg.mxu0
  %v681 = vsel %vm652, %v501, 0
  %v684 = vsel %vm656, %v39, 0
  %686 = vmatpush.msra.mxu0 0.0
  %687 = vmatpush.msra.mxu0 0.0
  %688 = vmatpush.msra.mxu0 0.0
  %689 = vmatpush.msra.mxu0 0.0
  %690 = vmatpush.msra.mxu0 0.0
  %691 = vmatpush.msra.mxu0 0.0
  %692 = vmatpush.msra.mxu0 0.0
  %693 = vmatpush.msra.mxu0 0.0
  %694 = vmatpush.msra.mxu0 0.0
  %695 = vmatpush.msra.mxu0 0.0
  %696 = vmatpush.msra.mxu0 0.0
  %697 = vmatpush.msra.mxu0 0.0
  %698 = vmatpush.msra.mxu0 0.0
  %699 = vmatpush.msra.mxu0 0.0
  %700 = vmatpush.msra.mxu0 0.0
  %701 = vmatpush.msra.mxu0 %v684
  %702 = vmatmul.f32.gmra.mxu0 %v681
  %v703 = vpop.f32.mrf.mxu0
  %v704 = vadd.f32 0.0, %v703
  %705 = vdwg.mxu0
  %v707 = vsel %vm652, %v516, 0
  %v710 = vsel %vm656, %v40, 0
  %712 = vmatpush.msra.mxu0 0.0
  %713 = vmatpush.msra.mxu0 0.0
  %714 = vmatpush.msra.mxu0 0.0
  %715 = vmatpush.msra.mxu0 0.0
  %716 = vmatpush.msra.mxu0 0.0
  %717 = vmatpush.msra.mxu0 0.0
  %718 = vmatpush.msra.mxu0 0.0
  %719 = vmatpush.msra.mxu0 0.0
  %720 = vmatpush.msra.mxu0 0.0
  %721 = vmatpush.msra.mxu0 0.0
  %722 = vmatpush.msra.mxu0 0.0
  %723 = vmatpush.msra.mxu0 0.0
  %724 = vmatpush.msra.mxu0 0.0
  %725 = vmatpush.msra.mxu0 0.0
  %726 = vmatpush.msra.mxu0 0.0
  %727 = vmatpush.msra.mxu0 %v710
  %728 = vmatmul.f32.gmra.mxu0 %v707
  %v729 = vpop.f32.mrf.mxu0
  %v730 = vadd.f32 0.0, %v729
  %731 = vdwg.mxu0
  %v733 = vsel %vm652, %v531, 0
  %v736 = vsel %vm656, %v41, 0
  %738 = vmatpush.msra.mxu0 0.0
  %739 = vmatpush.msra.mxu0 0.0
  %740 = vmatpush.msra.mxu0 0.0
  %741 = vmatpush.msra.mxu0 0.0
  %742 = vmatpush.msra.mxu0 0.0
  %743 = vmatpush.msra.mxu0 0.0
  %744 = vmatpush.msra.mxu0 0.0
  %745 = vmatpush.msra.mxu0 0.0
  %746 = vmatpush.msra.mxu0 0.0
  %747 = vmatpush.msra.mxu0 0.0
  %748 = vmatpush.msra.mxu0 0.0
  %749 = vmatpush.msra.mxu0 0.0
  %750 = vmatpush.msra.mxu0 0.0
  %751 = vmatpush.msra.mxu0 0.0
  %752 = vmatpush.msra.mxu0 0.0
  %753 = vmatpush.msra.mxu0 %v736
  %754 = vmatmul.f32.gmra.mxu0 %v733
  %v755 = vpop.f32.mrf.mxu0
  %v756 = vadd.f32 0.0, %v755
  %757 = vdwg.mxu0
  %v759 = vsel %vm652, %v546, 0
  %v762 = vsel %vm656, %v42, 0
  %764 = vmatpush.msra.mxu0 0.0
  %765 = vmatpush.msra.mxu0 0.0
  %766 = vmatpush.msra.mxu0 0.0
  %767 = vmatpush.msra.mxu0 0.0
  %768 = vmatpush.msra.mxu0 0.0
  %769 = vmatpush.msra.mxu0 0.0
  %770 = vmatpush.msra.mxu0 0.0
  %771 = vmatpush.msra.mxu0 0.0
  %772 = vmatpush.msra.mxu0 0.0
  %773 = vmatpush.msra.mxu0 0.0
  %774 = vmatpush.msra.mxu0 0.0
  %775 = vmatpush.msra.mxu0 0.0
  %776 = vmatpush.msra.mxu0 0.0
  %777 = vmatpush.msra.mxu0 0.0
  %778 = vmatpush.msra.mxu0 0.0
  %779 = vmatpush.msra.mxu0 %v762
  %780 = vmatmul.f32.gmra.mxu0 %v759
  %v781 = vpop.f32.mrf.mxu0
  %v782 = vadd.f32 0.0, %v781
  %783 = vdwg.mxu0
  %v785 = vsel %vm652, %v561, 0
  %v788 = vsel %vm656, %v43, 0
  %790 = vmatpush.msra.mxu0 0.0
  %791 = vmatpush.msra.mxu0 0.0
  %792 = vmatpush.msra.mxu0 0.0
  %793 = vmatpush.msra.mxu0 0.0
  %794 = vmatpush.msra.mxu0 0.0
  %795 = vmatpush.msra.mxu0 0.0
  %796 = vmatpush.msra.mxu0 0.0
  %797 = vmatpush.msra.mxu0 0.0
  %798 = vmatpush.msra.mxu0 0.0
  %799 = vmatpush.msra.mxu0 0.0
  %800 = vmatpush.msra.mxu0 0.0
  %801 = vmatpush.msra.mxu0 0.0
  %802 = vmatpush.msra.mxu0 0.0
  %803 = vmatpush.msra.mxu0 0.0
  %804 = vmatpush.msra.mxu0 0.0
  %805 = vmatpush.msra.mxu0 %v788
  %806 = vmatmul.f32.gmra.mxu0 %v785
  %v807 = vpop.f32.mrf.mxu0
  %v808 = vadd.f32 0.0, %v807
  %809 = vdwg.mxu0
  %v811 = vsel %vm652, %v576, 0
  %v814 = vsel %vm656, %v44, 0
  %816 = vmatpush.msra.mxu0 0.0
  %817 = vmatpush.msra.mxu0 0.0
  %818 = vmatpush.msra.mxu0 0.0
  %819 = vmatpush.msra.mxu0 0.0
  %820 = vmatpush.msra.mxu0 0.0
  %821 = vmatpush.msra.mxu0 0.0
  %822 = vmatpush.msra.mxu0 0.0
  %823 = vmatpush.msra.mxu0 0.0
  %824 = vmatpush.msra.mxu0 0.0
  %825 = vmatpush.msra.mxu0 0.0
  %826 = vmatpush.msra.mxu0 0.0
  %827 = vmatpush.msra.mxu0 0.0
  %828 = vmatpush.msra.mxu0 0.0
  %829 = vmatpush.msra.mxu0 0.0
  %830 = vmatpush.msra.mxu0 0.0
  %831 = vmatpush.msra.mxu0 %v814
  %832 = vmatmul.f32.gmra.mxu0 %v811
  %v833 = vpop.f32.mrf.mxu0
  %v834 = vadd.f32 0.0, %v833
  %835 = vdwg.mxu0
  %v837 = vsel %vm652, %v591, 0
  %v840 = vsel %vm656, %v45, 0
  %842 = vmatpush.msra.mxu0 0.0
  %843 = vmatpush.msra.mxu0 0.0
  %844 = vmatpush.msra.mxu0 0.0
  %845 = vmatpush.msra.mxu0 0.0
  %846 = vmatpush.msra.mxu0 0.0
  %847 = vmatpush.msra.mxu0 0.0
  %848 = vmatpush.msra.mxu0 0.0
  %849 = vmatpush.msra.mxu0 0.0
  %850 = vmatpush.msra.mxu0 0.0
  %851 = vmatpush.msra.mxu0 0.0
  %852 = vmatpush.msra.mxu0 0.0
  %853 = vmatpush.msra.mxu0 0.0
  %854 = vmatpush.msra.mxu0 0.0
  %855 = vmatpush.msra.mxu0 0.0
  %856 = vmatpush.msra.mxu0 0.0
  %857 = vmatpush.msra.mxu0 %v840
  %858 = vmatmul.f32.gmra.mxu0 %v837
  %v859 = vpop.f32.mrf.mxu0
  %v860 = vadd.f32 0.0, %v859
  %861 = vdwg.mxu0
  %v863 = vsel %vm652, %v606, 0
  %v866 = vsel %vm656, %v46, 0
  %868 = vmatpush.msra.mxu0 0.0
  %869 = vmatpush.msra.mxu0 0.0
  %870 = vmatpush.msra.mxu0 0.0
  %871 = vmatpush.msra.mxu0 0.0
  %872 = vmatpush.msra.mxu0 0.0
  %873 = vmatpush.msra.mxu0 0.0
  %874 = vmatpush.msra.mxu0 0.0
  %875 = vmatpush.msra.mxu0 0.0
  %876 = vmatpush.msra.mxu0 0.0
  %877 = vmatpush.msra.mxu0 0.0
  %878 = vmatpush.msra.mxu0 0.0
  %879 = vmatpush.msra.mxu0 0.0
  %880 = vmatpush.msra.mxu0 0.0
  %881 = vmatpush.msra.mxu0 0.0
  %882 = vmatpush.msra.mxu0 0.0
  %883 = vmatpush.msra.mxu0 %v866
  %884 = vmatmul.f32.gmra.mxu0 %v863
  %v885 = vpop.f32.mrf.mxu0
  %v886 = vadd.f32 0.0, %v885
  %887 = vdwg.mxu0
  %v889 = vsel %vm652, %v621, 0
  %v892 = vsel %vm656, %v47, 0
  %894 = vmatpush.msra.mxu0 0.0
  %895 = vmatpush.msra.mxu0 0.0
  %896 = vmatpush.msra.mxu0 0.0
  %897 = vmatpush.msra.mxu0 0.0
  %898 = vmatpush.msra.mxu0 0.0
  %899 = vmatpush.msra.mxu0 0.0
  %900 = vmatpush.msra.mxu0 0.0
  %901 = vmatpush.msra.mxu0 0.0
  %902 = vmatpush.msra.mxu0 0.0
  %903 = vmatpush.msra.mxu0 0.0
  %904 = vmatpush.msra.mxu0 0.0
  %905 = vmatpush.msra.mxu0 0.0
  %906 = vmatpush.msra.mxu0 0.0
  %907 = vmatpush.msra.mxu0 0.0
  %908 = vmatpush.msra.mxu0 0.0
  %909 = vmatpush.msra.mxu0 %v892
  %910 = vmatmul.f32.gmra.mxu0 %v889
  %v911 = vpop.f32.mrf.mxu0
  %v912 = vadd.f32 0.0, %v911
  %913 = vdwg.mxu0
  %v915 = vsel %vm652, %v636, 0
  %v918 = vsel %vm656, %v48, 0
  %920 = vmatpush.msra.mxu0 0.0
  %921 = vmatpush.msra.mxu0 0.0
  %922 = vmatpush.msra.mxu0 0.0
  %923 = vmatpush.msra.mxu0 0.0
  %924 = vmatpush.msra.mxu0 0.0
  %925 = vmatpush.msra.mxu0 0.0
  %926 = vmatpush.msra.mxu0 0.0
  %927 = vmatpush.msra.mxu0 0.0
  %928 = vmatpush.msra.mxu0 0.0
  %929 = vmatpush.msra.mxu0 0.0
  %930 = vmatpush.msra.mxu0 0.0
  %931 = vmatpush.msra.mxu0 0.0
  %932 = vmatpush.msra.mxu0 0.0
  %933 = vmatpush.msra.mxu0 0.0
  %934 = vmatpush.msra.mxu0 0.0
  %935 = vmatpush.msra.mxu0 %v918
  %936 = vmatmul.f32.gmra.mxu0 %v915
  %v937 = vpop.f32.mrf.mxu0
  %v938 = vadd.f32 0.0, %v937
  %939 = vdwg.mxu0
  %v941 = vsel %vm652, %v651, 0
  %v944 = vsel %vm656, %v49, 0
  %946 = vmatpush.msra.mxu0 0.0
  %947 = vmatpush.msra.mxu0 0.0
  %948 = vmatpush.msra.mxu0 0.0
  %949 = vmatpush.msra.mxu0 0.0
  %950 = vmatpush.msra.mxu0 0.0
  %951 = vmatpush.msra.mxu0 0.0
  %952 = vmatpush.msra.mxu0 0.0
  %953 = vmatpush.msra.mxu0 0.0
  %954 = vmatpush.msra.mxu0 0.0
  %955 = vmatpush.msra.mxu0 0.0
  %956 = vmatpush.msra.mxu0 0.0
  %957 = vmatpush.msra.mxu0 0.0
  %958 = vmatpush.msra.mxu0 0.0
  %959 = vmatpush.msra.mxu0 0.0
  %960 = vmatpush.msra.mxu0 0.0
  %961 = vmatpush.msra.mxu0 %v944
  %962 = vmatmul.f32.gmra.mxu0 %v941
  %v963 = vpop.f32.mrf.mxu0
  %v964 = vadd.f32 0.0, %v963
  %965 = vdwg.mxu0
  %vm966 = vcmask 61440
  %967 = vst.msk [vmem:[%s3] sm:$0x1f] %vm966, %v678
  %968 = vst.msk [vmem:[%s3 + $0x8] sm:$0x1f] %vm966, %v704
  %969 = vst.msk [vmem:[%s3 + $0x10] sm:$0x1f] %vm966, %v730
  %970 = vst.msk [vmem:[%s3 + $0x18] sm:$0x1f] %vm966, %v756
  %971 = vst.msk [vmem:[%s3 + $0x20] sm:$0x1f] %vm966, %v782
  %972 = vst.msk [vmem:[%s3 + $0x28] sm:$0x1f] %vm966, %v808
  %973 = vst.msk [vmem:[%s3 + $0x30] sm:$0x1f] %vm966, %v834
  %974 = vst.msk [vmem:[%s3 + $0x38] sm:$0x1f] %vm966, %v860
  %975 = vst.msk [vmem:[%s3 + $0x40] sm:$0x1f] %vm966, %v886
  %976 = vst.msk [vmem:[%s3 + $0x48] sm:$0x1f] %vm966, %v912
  %977 = vst.msk [vmem:[%s3 + $0x50] sm:$0x1f] %vm966, %v938
  %978 = vst.msk [vmem:[%s3 + $0x58] sm:$0x1f] %vm966, %v964
  // Predicated region
  $region14: #{diag_attention.2} parent=0 // pred_check
    _
  $region15: #{diag_attention.2} parent=0 // pred_check_branch
    %980 = sbr.rel (0) target = $region17
  $region16: #{diag_attention.2} parent=0 // pred_region
    _
  $region17: #{diag_attention.2} parent=0 // pred_fallthru
    _
  // Predicated region
  $region18: #{diag_attention.2} parent=0 // pred_check
    _
  $region19: #{diag_attention.2} parent=0 // pred_check_branch
    %982 = sbr.rel (0) target = $region21
  $region20: #{diag_attention.2} parent=0 // pred_region
    _
  $region21: #{diag_attention.2} parent=0 // pred_fallthru
    _

</llo_original>
